<compile_context>
chip_gen: v7x
topology: tpu7x:2x2x1
jax: 0.10.0
libtpu: 0.0.40
codegen_flags: <defaults>
</compile_context>

<pallas_src>
import functools
import math

import jax
import jax.numpy as jnp
from jax.experimental import pallas as pl
from jax.experimental.pallas import tpu as pltpu


# ----------------------------------------------------------------------------- kernel

def _mlp_kernel(x_ref, *refs, num_layers, sigmoid_output, mm_dtype):
    """Fused MLP. refs = (w0, b0, w1, b1, ..., w_{L-1}, b_{L-1}, out)."""
    o_ref = refs[-1]
    wb = refs[:-1]
    h = x_ref[...]                                     # f32 row tile, stays in VMEM/vregs
    for i in range(num_layers):                        # statically unrolled at trace time
        w = wb[2 * i][...]                             # bf16 weight (K_i, N_i)
        b = wb[2 * i + 1][...]                         # f32 bias (1, N_i)
        y = jnp.dot(h.astype(mm_dtype), w.astype(mm_dtype),
                    preferred_element_type=jnp.float32)    # MXU, f32 accumulate
        y = y + b                                      # VPU epilogue
        h = jnp.maximum(y, 0.0) if i < num_layers - 1 else y
    if sigmoid_output:
        h = jax.nn.sigmoid(h)                          # EUP epilogue
    o_ref[...] = h.astype(o_ref.dtype)


# ----------------------------------------------------------------------------- wrapper

def _pick_row_tile(m):
    """Row-tile choice: full extent when small (always legal), else the largest
    power-of-two tile that divides M; otherwise 512 (multiple of 8, ragged tail
    is masked by Pallas)."""
    if m <= 1024:
        return m
    for t in (1024, 512, 256, 128, 64, 32, 16, 8):
        if m % t == 0:
            return t
    return 512


def mlp_forward(params, x, modality=None, *, sigmoid_output=False,
                mm_dtype=jnp.bfloat16):
    """Fused MLP forward. x: (..., input_dim). `modality` mirrors the PyTorch
    signature but (as in the reference forward) is unused."""
    del modality
    ws, bs = params["w"], params["b"]
    num_layers = len(ws)
    N = ws[-1].shape[1]

    lead_shape = x.shape[:-1]
    K = x.shape[-1]
    M = int(math.prod(lead_shape)) if lead_shape else 1
    x2 = x.reshape(M, K).astype(jnp.float32)

    tm = _pick_row_tile(M)
    grid = (pl.cdiv(M, tm),)

    in_specs = [pl.BlockSpec((tm, K), lambda i: (i, 0))]
    args = [x2]
    flops = 0
    param_bytes = 0
    for w, b in zip(ws, bs):
        kin, kout = w.shape
        in_specs.append(pl.BlockSpec((kin, kout), lambda i: (0, 0)))   # replicated weight
        in_specs.append(pl.BlockSpec((1, kout), lambda i: (0, 0)))     # replicated bias
        args.append(w)
        args.append(b.reshape(1, kout))
        flops += 2 * M * kin * kout
        param_bytes += w.size * w.dtype.itemsize + b.size * b.dtype.itemsize

    cost = pl.CostEstimate(
        flops=flops,
        transcendentals=M * N if sigmoid_output else 0,
        bytes_accessed=x2.size * 4 + M * N * 4 + param_bytes,
    )

    out = pl.pallas_call(
        functools.partial(_mlp_kernel, num_layers=num_layers,
                          sigmoid_output=sigmoid_output, mm_dtype=mm_dtype),
        grid=grid,
        in_specs=in_specs,
        out_specs=pl.BlockSpec((tm, N), lambda i: (i, 0)),
        out_shape=jax.ShapeDtypeStruct((M, N), jnp.float32),
        compiler_params=pltpu.CompilerParams(
            dimension_semantics=("parallel",),         # row tiles independent -> megacore OK
            vmem_limit_bytes=64 * 1024 * 1024),
        cost_estimate=cost,
    )(*args)

    return out.reshape(*lead_shape, N)


# ----------------------------------------------------------------------------- reference & init

def mlp_reference(params, x, *, sigmoid_output=False, mm_dtype=jnp.bfloat16):
    """Plain-JAX reference with the same bf16-operand / f32-accumulate policy."""
    h = x.astype(jnp.float32)
    n = len(params["w"])
    for i, (w, b) in enumerate(zip(params["w"], params["b"])):
        y = jnp.dot(h.astype(mm_dtype), w.astype(mm_dtype),
                    preferred_element_type=jnp.float32) + b
        h = jnp.maximum(y, 0.0) if i < n - 1 else y
    if sigmoid_output:
        h = jax.nn.sigmoid(h)
    return h


def init_mlp_params(key, input_dim, hidden_dim, output_dim, num_layers, scale=0.1):
    """Matches PyTorch layer sizing: zip([input_dim]+h, h+[output_dim]).
    Weights stored bf16 (halves DMA bytes), biases f32."""
    h = [hidden_dim] * (num_layers - 1)
    dims = list(zip([input_dim] + h, h + [output_dim]))
    keys = jax.random.split(key, 2 * num_layers)
    ws, bs = [], []
    for li, (n_in, n_out) in enumerate(dims):
        w = scale * jax.random.normal(keys[2 * li], (n_in, n_out), jnp.float32)
        b = scale * jax.random.normal(keys[2 * li + 1], (n_out,), jnp.float32)
        ws.append(w.astype(jnp.bfloat16))
        bs.append(b)
    return {"w": ws, "b": bs}


# ----------------------------------------------------------------------------- driver

if __name__ == "__main__":
    key = jax.random.PRNGKey(0)
    k_p, k_x, k_p2, k_x3 = jax.random.split(key, 4)

    # Toy-scale shapes consistent with a SAM hypernetwork MLP head:
    # M tokens/rows, input_dim=32, hidden_dim=64, output_dim=16, 3 layers.
    M, input_dim, hidden_dim, output_dim, num_layers = 16, 32, 64, 16, 3
    params = init_mlp_params(k_p, input_dim, hidden_dim, output_dim, num_layers)
    x = 0.5 * jax.random.normal(k_x, (M, input_dim), jnp.float32)
    modality = jnp.zeros((M,), jnp.int32)   # present in the PyTorch signature, unused in forward

    fwd = jax.jit(functools.partial(mlp_forward, sigmoid_output=False))
    y = fwd(params, x, modality)
    jax.block_until_ready(y)
    assert y.shape == (M, output_dim), y.shape
    y_ref = mlp_reference(params, x, sigmoid_output=False)
    assert jnp.allclose(y, y_ref, rtol=1e-3, atol=1e-3), float(jnp.max(jnp.abs(y - y_ref)))

    # Exercise sigmoid_output=True, a different depth and a 3-D (batched) input.
    params2 = init_mlp_params(k_p2, input_dim, hidden_dim, output_dim, 2)
    x3 = 0.5 * jax.random.normal(k_x3, (2, 5, input_dim), jnp.float32)   # ragged row count (10)
    fwd2 = jax.jit(functools.partial(mlp_forward, sigmoid_output=True))
    y2 = fwd2(params2, x3, None)
    jax.block_until_ready(y2)
    y2_ref = mlp_reference(params2, x3.reshape(-1, input_dim),
                           sigmoid_output=True).reshape(2, 5, output_dim)
    assert y2.shape == (2, 5, output_dim), y2.shape
    assert jnp.allclose(y2, y2_ref, rtol=1e-3, atol=1e-3), float(jnp.max(jnp.abs(y2 - y2_ref)))

    print("KERNEL_OK")
</pallas_src>

<mosaic_0001>
module attributes {stable_mosaic.version = 11 : i64} {
  func.func @_mlp_kernel(%arg0: i32, %arg1: memref<16x32xf32, #tpu.memory_space<vmem>>, %arg2: memref<32x64xbf16, #tpu.memory_space<vmem>>, %arg3: memref<1x64xf32, #tpu.memory_space<vmem>>, %arg4: memref<64x64xbf16, #tpu.memory_space<vmem>>, %arg5: memref<1x64xf32, #tpu.memory_space<vmem>>, %arg6: memref<64x16xbf16, #tpu.memory_space<vmem>>, %arg7: memref<1x16xf32, #tpu.memory_space<vmem>>, %arg8: memref<16x16xf32, #tpu.memory_space<vmem>>) attributes {dimension_semantics = [#tpu.dimension_semantics<parallel>], iteration_bounds = array<i64: 1>, scalar_prefetch = 0 : i64, scratch_operands = 0 : i64, tpu.core_type = #tpu.core_type<tc>, window_params = [{transform_indices = @transform_0, window_bounds = array<i64: 16, 32>}, {pipeline_mode = #tpu.pipeline_mode<synchronous>, transform_indices = @transform_1, window_bounds = array<i64: 32, 64>}, {pipeline_mode = #tpu.pipeline_mode<synchronous>, transform_indices = @transform_2, window_bounds = array<i64: 1, 64>}, {pipeline_mode = #tpu.pipeline_mode<synchronous>, transform_indices = @transform_3, window_bounds = array<i64: 64, 64>}, {pipeline_mode = #tpu.pipeline_mode<synchronous>, transform_indices = @transform_4, window_bounds = array<i64: 1, 64>}, {pipeline_mode = #tpu.pipeline_mode<synchronous>, transform_indices = @transform_5, window_bounds = array<i64: 64, 16>}, {pipeline_mode = #tpu.pipeline_mode<synchronous>, transform_indices = @transform_6, window_bounds = array<i64: 1, 16>}, {transform_indices = @transform_7, window_bounds = array<i64: 16, 16>}]} {
    %c0 = arith.constant 0 : index
    %c0_0 = arith.constant 0 : index
    %0 = vector.load %arg1[%c0, %c0_0] : memref<16x32xf32, #tpu.memory_space<vmem>>, vector<16x32xf32>
    %c0_1 = arith.constant 0 : index
    %c0_2 = arith.constant 0 : index
    %1 = vector.load %arg2[%c0_1, %c0_2] : memref<32x64xbf16, #tpu.memory_space<vmem>>, vector<32x64xbf16>
    %c0_3 = arith.constant 0 : index
    %c0_4 = arith.constant 0 : index
    %2 = vector.load %arg3[%c0_3, %c0_4] : memref<1x64xf32, #tpu.memory_space<vmem>>, vector<1x64xf32>
    %3 = arith.truncf %0 : vector<16x32xf32> to vector<16x32xbf16>
    %cst = arith.constant dense<0.000000e+00> : vector<16x64xf32>
    %4 = tpu.matmul %3, %1, %cst {dimension_numbers = #tpu.dot_dimension_numbers<[1], [0], [0], [1], [0, 0, 1, 1], [], []>} : vector<16x32xbf16>, vector<32x64xbf16>, vector<16x64xf32> -> vector<16x64xf32>
    %5 = vector.broadcast %2 : vector<1x64xf32> to vector<16x64xf32>
    %6 = arith.addf %4, %5 : vector<16x64xf32>
    %cst_5 = arith.constant 0.000000e+00 : f32
    %7 = vector.broadcast %cst_5 : f32 to vector<16x64xf32>
    %8 = arith.maximumf %6, %7 : vector<16x64xf32>
    %c0_6 = arith.constant 0 : index
    %c0_7 = arith.constant 0 : index
    %9 = vector.load %arg4[%c0_6, %c0_7] : memref<64x64xbf16, #tpu.memory_space<vmem>>, vector<64x64xbf16>
    %c0_8 = arith.constant 0 : index
    %c0_9 = arith.constant 0 : index
    %10 = vector.load %arg5[%c0_8, %c0_9] : memref<1x64xf32, #tpu.memory_space<vmem>>, vector<1x64xf32>
    %11 = arith.truncf %8 : vector<16x64xf32> to vector<16x64xbf16>
    %cst_10 = arith.constant dense<0.000000e+00> : vector<16x64xf32>
    %12 = tpu.matmul %11, %9, %cst_10 {dimension_numbers = #tpu.dot_dimension_numbers<[1], [0], [0], [1], [0, 0, 1, 1], [], []>} : vector<16x64xbf16>, vector<64x64xbf16>, vector<16x64xf32> -> vector<16x64xf32>
    %13 = vector.broadcast %10 : vector<1x64xf32> to vector<16x64xf32>
    %14 = arith.addf %12, %13 : vector<16x64xf32>
    %cst_11 = arith.constant 0.000000e+00 : f32
    %15 = vector.broadcast %cst_11 : f32 to vector<16x64xf32>
    %16 = arith.maximumf %14, %15 : vector<16x64xf32>
    %c0_12 = arith.constant 0 : index
    %c0_13 = arith.constant 0 : index
    %17 = vector.load %arg6[%c0_12, %c0_13] : memref<64x16xbf16, #tpu.memory_space<vmem>>, vector<64x16xbf16>
    %c0_14 = arith.constant 0 : index
    %c0_15 = arith.constant 0 : index
    %18 = vector.load %arg7[%c0_14, %c0_15] : memref<1x16xf32, #tpu.memory_space<vmem>>, vector<1x16xf32>
    %19 = arith.truncf %16 : vector<16x64xf32> to vector<16x64xbf16>
    %cst_16 = arith.constant dense<0.000000e+00> : vector<16x16xf32>
    %20 = tpu.matmul %19, %17, %cst_16 {dimension_numbers = #tpu.dot_dimension_numbers<[1], [0], [0], [1], [0, 0, 1, 1], [], []>} : vector<16x64xbf16>, vector<64x16xbf16>, vector<16x16xf32> -> vector<16x16xf32>
    %21 = vector.broadcast %18 : vector<1x16xf32> to vector<16x16xf32>
    %22 = arith.addf %20, %21 : vector<16x16xf32>
    %c0_17 = arith.constant 0 : index
    %c0_18 = arith.constant 0 : index
    %23 = vector.load %arg8[%c0_17, %c0_18] : memref<16x16xf32, #tpu.memory_space<vmem>>, vector<16x16xf32>
    tpu.vector_store %arg8[%c0_17, %c0_18], %22 {strides = array<i32>} : memref<16x16xf32, #tpu.memory_space<vmem>>, vector<16x16xf32>,
    return
  }
  func.func @transform_0(%arg0: i32) -> (i32, i32) {
    %c0_i32 = arith.constant 0 : i32
    %c0_i32_0 = arith.constant 0 : i32
    return %arg0, %c0_i32 : i32, i32
  }
  func.func @transform_1(%arg0: i32) -> (i32, i32) {
    %c0_i32 = arith.constant 0 : i32
    %c0_i32_0 = arith.constant 0 : i32
    %c0_i32_1 = arith.constant 0 : i32
    return %c0_i32, %c0_i32_0 : i32, i32
  }
  func.func @transform_2(%arg0: i32) -> (i32, i32) {
    %c0_i32 = arith.constant 0 : i32
    %c0_i32_0 = arith.constant 0 : i32
    %c0_i32_1 = arith.constant 0 : i32
    return %c0_i32, %c0_i32_0 : i32, i32
  }
  func.func @transform_3(%arg0: i32) -> (i32, i32) {
    %c0_i32 = arith.constant 0 : i32
    %c0_i32_0 = arith.constant 0 : i32
    %c0_i32_1 = arith.constant 0 : i32
    return %c0_i32, %c0_i32_0 : i32, i32
  }
  func.func @transform_4(%arg0: i32) -> (i32, i32) {
    %c0_i32 = arith.constant 0 : i32
    %c0_i32_0 = arith.constant 0 : i32
    %c0_i32_1 = arith.constant 0 : i32
    return %c0_i32, %c0_i32_0 : i32, i32
  }
  func.func @transform_5(%arg0: i32) -> (i32, i32) {
    %c0_i32 = arith.constant 0 : i32
    %c0_i32_0 = arith.constant 0 : i32
    %c0_i32_1 = arith.constant 0 : i32
    return %c0_i32, %c0_i32_0 : i32, i32
  }
  func.func @transform_6(%arg0: i32) -> (i32, i32) {
    %c0_i32 = arith.constant 0 : i32
    %c0_i32_0 = arith.constant 0 : i32
    %c0_i32_1 = arith.constant 0 : i32
    return %c0_i32, %c0_i32_0 : i32, i32
  }
  func.func @transform_7(%arg0: i32) -> (i32, i32) {
    %c0_i32 = arith.constant 0 : i32
    %c0_i32_0 = arith.constant 0 : i32
    return %arg0, %c0_i32 : i32, i32
  }
}

</mosaic_0001>

<llo_original>
// kernel: mlp_forward.1
$region0: #{mlp_forward.1}
  #allocation0 [shape = 'u32[]', space=smem, size = 0x4, offset = 0x4, fixed_abs, tag = 'smem constant byte address 0x4 - core index']
  #allocation1 [shape = 'u32[144,128]{1,0:T(1,128)}', space=vmem, size = 0x12000, scoped, tag = 'internal scratch']
  %s0 = inlined_call_operand.hbm [shape: f32[16,32], index: 0, kind: input, shape index: {}]
  %s1 = inlined_call_operand.hbm [shape: bf16[32,64], index: 1, kind: input, shape index: {}]
  %s2 = inlined_call_operand.hbm [shape: f32[1,64], index: 2, kind: input, shape index: {}]
  %s3 = inlined_call_operand.hbm [shape: bf16[64,64], index: 3, kind: input, shape index: {}]
  %s4 = inlined_call_operand.hbm [shape: f32[1,64], index: 4, kind: input, shape index: {}]
  %s5 = inlined_call_operand.hbm [shape: bf16[64,16], index: 5, kind: input, shape index: {}]
  %s6 = inlined_call_operand.hbm [shape: f32[1,16], index: 6, kind: input, shape index: {}]
  %s7 = inlined_call_operand.hbm [shape: f32[16,16], index: 7, kind: output, shape index: {}]
  %s8 = sld [smem:[#allocation0]]
  $region66: #{mlp_forward.1} parent=0
    _
  %s10 = ssub.s32 1, %s8
  %s11 = scalar_select 0, %s10, %s8
  $region1: #{mlp_forward.1} parent=0
    #allocation2 [shape = 'u8[8192]{0}', space=vmem, size = 0x2000, scoped, tag = 'input window, operand 0, single buffered']
    #allocation3 [shape = 's32[1]{0}', space=sflag, size = 0x4, scoped, tag = 'scoped memory for mlp_forward.1']
    #allocation4 [shape = 's32[1]{0}', space=sflag, size = 0x4, scoped, tag = 'scoped memory for mlp_forward.1']
    #allocation5 [shape = 'u8[8192]{0}', space=vmem, size = 0x2000, scoped, tag = 'input window, operand 1, single buffered']
    #allocation6 [shape = 's32[1]{0}', space=sflag, size = 0x4, scoped, tag = 'scoped memory for mlp_forward.1']
    #allocation7 [shape = 'u8[512]{0}', space=vmem, size = 0x400, scoped, tag = 'input window, operand 2, single buffered']
    #allocation8 [shape = 'u8[16384]{0}', space=vmem, size = 0x4000, scoped, tag = 'input window, operand 3, single buffered']
    #allocation9 [shape = 's32[1]{0}', space=sflag, size = 0x4, scoped, tag = 'scoped memory for mlp_forward.1']
    #allocation10 [shape = 'u8[512]{0}', space=vmem, size = 0x400, scoped, tag = 'input window, operand 4, single buffered']
    #allocation11 [shape = 'u8[16384]{0}', space=vmem, size = 0x4000, scoped, tag = 'input window, operand 5, single buffered']
    #allocation12 [shape = 's32[1]{0}', space=sflag, size = 0x4, scoped, tag = 'scoped memory for mlp_forward.1']
    #allocation13 [shape = 'u8[512]{0}', space=vmem, size = 0x400, scoped, tag = 'input window, operand 6, single buffered']
    #allocation14 [shape = 'u8[8192]{0}', space=vmem, size = 0x2000, scoped, tag = 'output window, operand 0, single buffered']
    %12 = vsyncpa [#allocation3], 0
    %13 = vsyncpa [#allocation6], 0
    %14 = vsyncpa [#allocation9], 0
    %15 = vsyncpa [#allocation12], 0
    %16 = vsyncpa [#allocation4], 0
    // Predicated region
    $region2: #{mlp_forward.1} parent=1 // pred_check
      _
    $region3: #{mlp_forward.1} parent=1 // pred_check_branch
      %18 = sbr.rel (0) target = $region5
    $region4: #{mlp_forward.1} parent=1 // pred_region
      %s20 = ssub.s32 256, 256
      %21 = vsyncadd [#allocation3], %s20
      %s22 = sshll.u32 [#allocation2], 4
      %s23 = int_to_ptr.vmem [resolvable:$true] %s22
      %28 = dma.hbm_to_vmem [thread:$0]  %s0, 256, %s23, [#allocation3], 128, 128, 8
    $region5: #{mlp_forward.1} parent=1 // pred_fallthru
      _
    // Predicated region
    $region6: #{mlp_forward.1} parent=1 // pred_check
      _
    $region7: #{mlp_forward.1} parent=1 // pred_check_branch
      %30 = sbr.rel (0) target = $region9
    $region8: #{mlp_forward.1} parent=1 // pred_region
      %s32 = ssub.s32 256, 256
      %33 = vsyncadd [#allocation6], %s32
      %s34 = sshll.u32 [#allocation5], 4
      %s35 = int_to_ptr.vmem [resolvable:$true] %s34
      %40 = dma.hbm_to_vmem [thread:$0]  %s1, 256, %s35, [#allocation6], 64, 64, 4
    $region9: #{mlp_forward.1} parent=1 // pred_fallthru
      _
    // Predicated region
    $region10: #{mlp_forward.1} parent=1 // pred_check
      _
    $region11: #{mlp_forward.1} parent=1 // pred_check_branch
      %42 = sbr.rel (0) target = $region13
    $region12: #{mlp_forward.1} parent=1 // pred_region
      %s44 = ssub.s32 16, 16
      %45 = vsyncadd [#allocation6], %s44
      %s47 = sshll.u32 [#allocation7], 4
      %s48 = int_to_ptr.vmem [resolvable:$true] %s47
      %50 = dma.hbm_to_vmem [thread:$0]  %s2, 16, %s48, [#allocation6]
    $region13: #{mlp_forward.1} parent=1 // pred_fallthru
      _
    // Predicated region
    $region14: #{mlp_forward.1} parent=1 // pred_check
      _
    $region15: #{mlp_forward.1} parent=1 // pred_check_branch
      %52 = sbr.rel (0) target = $region17
    $region16: #{mlp_forward.1} parent=1 // pred_region
      %s54 = ssub.s32 512, 512
      %55 = vsyncadd [#allocation9], %s54
      %s56 = sshll.u32 [#allocation8], 4
      %s57 = int_to_ptr.vmem [resolvable:$true] %s56
      %62 = dma.hbm_to_vmem [thread:$0]  %s3, 512, %s57, [#allocation9], 64, 64, 4
    $region17: #{mlp_forward.1} parent=1 // pred_fallthru
      _
    // Predicated region
    $region18: #{mlp_forward.1} parent=1 // pred_check
      _
    $region19: #{mlp_forward.1} parent=1 // pred_check_branch
      %64 = sbr.rel (0) target = $region21
    $region20: #{mlp_forward.1} parent=1 // pred_region
      %s66 = ssub.s32 16, 16
      %67 = vsyncadd [#allocation9], %s66
      %s69 = sshll.u32 [#allocation10], 4
      %s70 = int_to_ptr.vmem [resolvable:$true] %s69
      %72 = dma.hbm_to_vmem [thread:$0]  %s4, 16, %s70, [#allocation9]
    $region21: #{mlp_forward.1} parent=1 // pred_fallthru
      _
    // Predicated region
    $region22: #{mlp_forward.1} parent=1 // pred_check
      _
    $region23: #{mlp_forward.1} parent=1 // pred_check_branch
      %74 = sbr.rel (0) target = $region25
    $region24: #{mlp_forward.1} parent=1 // pred_region
      %s76 = ssub.s32 512, 512
      %77 = vsyncadd [#allocation12], %s76
      %s78 = sshll.u32 [#allocation11], 4
      %s79 = int_to_ptr.vmem [resolvable:$true] %s78
      %84 = dma.hbm_to_vmem [thread:$0]  %s5, 512, %s79, [#allocation12], 64, 64, 4
    $region25: #{mlp_forward.1} parent=1 // pred_fallthru
      _
    // Predicated region
    $region26: #{mlp_forward.1} parent=1 // pred_check
      _
    $region27: #{mlp_forward.1} parent=1 // pred_check_branch
      %86 = sbr.rel (0) target = $region29
    $region28: #{mlp_forward.1} parent=1 // pred_region
      %s88 = ssub.s32 16, 16
      %89 = vsyncadd [#allocation12], %s88
      %s91 = sshll.u32 [#allocation13], 4
      %s92 = int_to_ptr.vmem [resolvable:$true] %s91
      %94 = dma.hbm_to_vmem [thread:$0]  %s6, 16, %s92, [#allocation12]
    $region29: #{mlp_forward.1} parent=1 // pred_fallthru
      _
    // Predicated region
    $region30: #{mlp_forward.1} parent=1 // pred_check
      _
    $region31: #{mlp_forward.1} parent=1 // pred_check_branch
      %96 = sbr.rel (0) target = $region33
    $region32: #{mlp_forward.1} parent=1 // pred_region
      %97 = dma.done [#allocation3], 256
    $region33: #{mlp_forward.1} parent=1 // pred_fallthru
      _
    // Predicated region
    $region34: #{mlp_forward.1} parent=1 // pred_check
      _
    $region35: #{mlp_forward.1} parent=1 // pred_check_branch
      %99 = sbr.rel (0) target = $region37
    $region36: #{mlp_forward.1} parent=1 // pred_region
      %100 = dma.done [#allocation6], 256
    $region37: #{mlp_forward.1} parent=1 // pred_fallthru
      _
    // Predicated region
    $region38: #{mlp_forward.1} parent=1 // pred_check
      _
    $region39: #{mlp_forward.1} parent=1 // pred_check_branch
      %102 = sbr.rel (0) target = $region41
    $region40: #{mlp_forward.1} parent=1 // pred_region
      %103 = dma.done [#allocation6], 16
    $region41: #{mlp_forward.1} parent=1 // pred_fallthru
      _
    // Predicated region
    $region42: #{mlp_forward.1} parent=1 // pred_check
      _
    $region43: #{mlp_forward.1} parent=1 // pred_check_branch
      %105 = sbr.rel (0) target = $region45
    $region44: #{mlp_forward.1} parent=1 // pred_region
      %106 = dma.done [#allocation9], 512
    $region45: #{mlp_forward.1} parent=1 // pred_fallthru
      _
    // Predicated region
    $region46: #{mlp_forward.1} parent=1 // pred_check
      _
    $region47: #{mlp_forward.1} parent=1 // pred_check_branch
      %108 = sbr.rel (0) target = $region49
    $region48: #{mlp_forward.1} parent=1 // pred_region
      %109 = dma.done [#allocation9], 16
    $region49: #{mlp_forward.1} parent=1 // pred_fallthru
      _
    // Predicated region
    $region50: #{mlp_forward.1} parent=1 // pred_check
      _
    $region51: #{mlp_forward.1} parent=1 // pred_check_branch
      %111 = sbr.rel (0) target = $region53
    $region52: #{mlp_forward.1} parent=1 // pred_region
      %112 = dma.done [#allocation12], 512
    $region53: #{mlp_forward.1} parent=1 // pred_fallthru
      _
    // Predicated region
    $region54: #{mlp_forward.1} parent=1 // pred_check
      _
    $region55: #{mlp_forward.1} parent=1 // pred_check_branch
      %114 = sbr.rel (0) target = $region57
    $region56: #{mlp_forward.1} parent=1 // pred_region
      %115 = dma.done [#allocation12], 16
    $region57: #{mlp_forward.1} parent=1 // pred_fallthru
      _
    %v117 = vld [vmem:[#allocation2] sm:$0xff]
    %v118 = vld [vmem:[#allocation2 + $0x8] sm:$0xff]
    %v119 = vld [vmem:[#allocation5] sm:$0xf]
    %v120 = vld [vmem:[#allocation5 + $0x4] sm:$0xf]
    %v121 = vld [vmem:[#allocation5 + $0x8] sm:$0xf]
    %v122 = vld [vmem:[#allocation5 + $0xc] sm:$0xf]
    %v123 = vld [vmem:[#allocation7] sm:$0x1]
    %v124 = vpack.c.bf16 %v118, %v117
    %v126 = vlaneseq
    %v127 = vshrl.u32 %v126, 7
    %v128 = vsub.s32 0, %v127
    %v129 = vrot.slane %v123, %v128
    %v135 = vunpack.c.l.b16 %v119
    %v136 = vunpack.c.l.b16 %v120
    %v137 = vunpack.c.l.b16 %v121
    %v138 = vunpack.c.l.b16 %v122
    %v139 = vpack.c.b16 %v136, %v135
    %v140 = vpack.c.b16 %v138, %v137
    %vm143 = vcmask 261120
    %v145 = vsel %vm143, %v124, 0
    %147 = vmatprep.subr.bf16.mxu0 0
    %148 = vmatpush1.bf16.msra.mxu0 %v139
    %149 = vmatprep.subr.bf16.mxu0 0
    %150 = vmatpush1.bf16.msra.mxu0 %v140
    %151 = vmatprep.subr.bf16.mxu0 0
    %152 = vmatpush1.bf16.msra.mxu0 0
    %153 = vmatprep.subr.bf16.mxu0 0
    %154 = vmatpush1.bf16.msra.mxu0 0
    %155 = vmatprep.subr.bf16.mxu0 0
    %156 = vmatpush1.bf16.msra.mxu0 0
    %157 = vmatprep.subr.bf16.mxu0 0
    %158 = vmatpush1.bf16.msra.mxu0 0
    %159 = vmatprep.subr.bf16.mxu0 0
    %160 = vmatpush1.bf16.msra.mxu0 0
    %161 = vmatprep.subr.bf16.mxu0 0
    %162 = vmatpush1.bf16.msra.mxu0 0
    %163 = vmatprep.subr.bf16.mxu0 0
    %164 = vmatpush1.bf16.msra.mxu0 0
    %165 = vmatprep.subr.bf16.mxu0 0
    %166 = vmatpush1.bf16.msra.mxu0 0
    %167 = vmatprep.subr.bf16.mxu0 0
    %168 = vmatpush1.bf16.msra.mxu0 0
    %169 = vmatprep.subr.bf16.mxu0 0
    %170 = vmatpush1.bf16.msra.mxu0 0
    %171 = vmatprep.subr.bf16.mxu0 0
    %172 = vmatpush1.bf16.msra.mxu0 0
    %173 = vmatprep.subr.bf16.mxu0 0
    %174 = vmatpush1.bf16.msra.mxu0 0
    %175 = vmatprep.subr.bf16.mxu0 0
    %176 = vmatpush1.bf16.msra.mxu0 0
    %177 = vmatprep.subr.bf16.mxu0 0
    %178 = vmatpush1.bf16.msra.mxu0 0
    %179 = vmatprep.mubr.bf16.mxu0 0
    %180 = vmatmul.mubr.bf16.gmra.mrb[0].mxu0 %v145
    %v181 = vpop.f32.mrb[0].mxu0
    %v182 = vadd.f32 %v129, %v181
    %v183 = vpop.f32.mrb[0].mxu0
    %v184 = vpop.f32.mrb[0].mxu0
    %v185 = vadd.f32 %v129, %v184
    %v186 = vpop.f32.mrb[0].mxu0
    %187 = vdwg.mxu0
    %v188 = vmax.f32 %v182, 0.0
    %v189 = vmax.f32 %v185, 0.0
    %v190 = vld [vmem:[#allocation8] sm:$0xf]
    %v191 = vld [vmem:[#allocation8 + $0x4] sm:$0xf]
    %v192 = vld [vmem:[#allocation8 + $0x8] sm:$0xf]
    %v193 = vld [vmem:[#allocation8 + $0xc] sm:$0xf]
    %v194 = vld [vmem:[#allocation8 + $0x10] sm:$0xf]
    %v195 = vld [vmem:[#allocation8 + $0x14] sm:$0xf]
    %v196 = vld [vmem:[#allocation8 + $0x18] sm:$0xf]
    %v197 = vld [vmem:[#allocation8 + $0x1c] sm:$0xf]
    %v198 = vld [vmem:[#allocation10] sm:$0x1]
    %v199 = vpack.c.bf16 %v189, %v188
    %v201 = vlaneseq
    %v202 = vshrl.u32 %v201, 7
    %v203 = vsub.s32 0, %v202
    %v204 = vrot.slane %v198, %v203
    %v214 = vunpack.c.l.b16 %v190
    %v215 = vunpack.c.l.b16 %v191
    %v216 = vunpack.c.l.b16 %v192
    %v217 = vunpack.c.l.b16 %v193
    %v218 = vunpack.c.l.b16 %v194
    %v219 = vunpack.c.l.b16 %v195
    %v220 = vunpack.c.l.b16 %v196
    %v221 = vunpack.c.l.b16 %v197
    %v222 = vpack.c.b16 %v215, %v214
    %v223 = vpack.c.b16 %v217, %v216
    %v224 = vpack.c.b16 %v219, %v218
    %v225 = vpack.c.b16 %v221, %v220
    %vm230 = vcmask 523264
    %v232 = vsel %vm230, %v199, 0
    %234 = vmatprep.subr.bf16.mxu0 0
    %235 = vmatpush1.bf16.msra.mxu0 %v222
    %236 = vmatprep.subr.bf16.mxu0 0
    %237 = vmatpush1.bf16.msra.mxu0 %v223
    %238 = vmatprep.subr.bf16.mxu0 0
    %239 = vmatpush1.bf16.msra.mxu0 %v224
    %240 = vmatprep.subr.bf16.mxu0 0
    %241 = vmatpush1.bf16.msra.mxu0 %v225
    %242 = vmatprep.subr.bf16.mxu0 0
    %243 = vmatpush1.bf16.msra.mxu0 0
    %244 = vmatprep.subr.bf16.mxu0 0
    %245 = vmatpush1.bf16.msra.mxu0 0
    %246 = vmatprep.subr.bf16.mxu0 0
    %247 = vmatpush1.bf16.msra.mxu0 0
    %248 = vmatprep.subr.bf16.mxu0 0
    %249 = vmatpush1.bf16.msra.mxu0 0
    %250 = vmatprep.subr.bf16.mxu0 0
    %251 = vmatpush1.bf16.msra.mxu0 0
    %252 = vmatprep.subr.bf16.mxu0 0
    %253 = vmatpush1.bf16.msra.mxu0 0
    %254 = vmatprep.subr.bf16.mxu0 0
    %255 = vmatpush1.bf16.msra.mxu0 0
    %256 = vmatprep.subr.bf16.mxu0 0
    %257 = vmatpush1.bf16.msra.mxu0 0
    %258 = vmatprep.subr.bf16.mxu0 0
    %259 = vmatpush1.bf16.msra.mxu0 0
    %260 = vmatprep.subr.bf16.mxu0 0
    %261 = vmatpush1.bf16.msra.mxu0 0
    %262 = vmatprep.subr.bf16.mxu0 0
    %263 = vmatpush1.bf16.msra.mxu0 0
    %264 = vmatprep.subr.bf16.mxu0 0
    %265 = vmatpush1.bf16.msra.mxu0 0
    %266 = vmatprep.mubr.bf16.mxu0 0
    %267 = vmatmul.mubr.bf16.gmra.mrb[0].mxu0 %v232
    %v268 = vpop.f32.mrb[0].mxu0
    %v269 = vadd.f32 %v204, %v268
    %v270 = vpop.f32.mrb[0].mxu0
    %v271 = vpop.f32.mrb[0].mxu0
    %v272 = vadd.f32 %v204, %v271
    %v273 = vpop.f32.mrb[0].mxu0
    %274 = vdwg.mxu0
    %v275 = vmax.f32 %v269, 0.0
    %v276 = vmax.f32 %v272, 0.0
    %v277 = vld [vmem:[#allocation11] sm:$0xf]
    %v278 = vld [vmem:[#allocation11 + $0x4] sm:$0xf]
    %v279 = vld [vmem:[#allocation11 + $0x8] sm:$0xf]
    %v280 = vld [vmem:[#allocation11 + $0xc] sm:$0xf]
    %v281 = vld [vmem:[#allocation11 + $0x10] sm:$0xf]
    %v282 = vld [vmem:[#allocation11 + $0x14] sm:$0xf]
    %v283 = vld [vmem:[#allocation11 + $0x18] sm:$0xf]
    %v284 = vld [vmem:[#allocation11 + $0x1c] sm:$0xf]
    %v285 = vld [vmem:[#allocation13] sm:$0x1]
    %v286 = vpack.c.bf16 %v276, %v275
    %v288 = vlaneseq
    %v289 = vshrl.u32 %v288, 7
    %v290 = vsub.s32 0, %v289
    %v291 = vrot.slane %v285, %v290
    %v301 = vunpack.c.l.b16 %v277
    %v302 = vunpack.c.l.b16 %v278
    %v303 = vunpack.c.l.b16 %v279
    %v304 = vunpack.c.l.b16 %v280
    %v305 = vunpack.c.l.b16 %v281
    %v306 = vunpack.c.l.b16 %v282
    %v307 = vunpack.c.l.b16 %v283
    %v308 = vunpack.c.l.b16 %v284
    %v309 = vpack.c.b16 %v302, %v301
    %v310 = vpack.c.b16 %v304, %v303
    %v311 = vpack.c.b16 %v306, %v305
    %v312 = vpack.c.b16 %v308, %v307
    %v318 = vsel %vm230, %v286, 0
    %320 = vmatprep.subr.bf16.mxu0 0
    %321 = vmatpush1.bf16.msra.mxu0 %v309
    %322 = vmatprep.subr.bf16.mxu0 0
    %323 = vmatpush1.bf16.msra.mxu0 %v310
    %324 = vmatprep.subr.bf16.mxu0 0
    %325 = vmatpush1.bf16.msra.mxu0 %v311
    %326 = vmatprep.subr.bf16.mxu0 0
    %327 = vmatpush1.bf16.msra.mxu0 %v312
    %328 = vmatprep.subr.bf16.mxu0 0
    %329 = vmatpush1.bf16.msra.mxu0 0
    %330 = vmatprep.subr.bf16.mxu0 0
    %331 = vmatpush1.bf16.msra.mxu0 0
    %332 = vmatprep.subr.bf16.mxu0 0
    %333 = vmatpush1.bf16.msra.mxu0 0
    %334 = vmatprep.subr.bf16.mxu0 0
    %335 = vmatpush1.bf16.msra.mxu0 0
    %336 = vmatprep.subr.bf16.mxu0 0
    %337 = vmatpush1.bf16.msra.mxu0 0
    %338 = vmatprep.subr.bf16.mxu0 0
    %339 = vmatpush1.bf16.msra.mxu0 0
    %340 = vmatprep.subr.bf16.mxu0 0
    %341 = vmatpush1.bf16.msra.mxu0 0
    %342 = vmatprep.subr.bf16.mxu0 0
    %343 = vmatpush1.bf16.msra.mxu0 0
    %344 = vmatprep.subr.bf16.mxu0 0
    %345 = vmatpush1.bf16.msra.mxu0 0
    %346 = vmatprep.subr.bf16.mxu0 0
    %347 = vmatpush1.bf16.msra.mxu0 0
    %348 = vmatprep.subr.bf16.mxu0 0
    %349 = vmatpush1.bf16.msra.mxu0 0
    %350 = vmatprep.subr.bf16.mxu0 0
    %351 = vmatpush1.bf16.msra.mxu0 0
    %352 = vmatprep.mubr.bf16.mxu0 0
    %353 = vmatmul.mubr.bf16.gmra.mrb[0].mxu0 %v318
    %v354 = vpop.f32.mrb[0].mxu0
    %v355 = vadd.f32 %v291, %v354
    %v356 = vpop.f32.mrb[0].mxu0
    %v357 = vpop.f32.mrb[0].mxu0
    %v358 = vadd.f32 %v291, %v357
    %v359 = vpop.f32.mrb[0].mxu0
    %360 = vdwg.mxu0
    %vm361 = vcmask 130048
    %362 = vst.msk [vmem:[#allocation14] sm:$0xff] %vm361, %v355
    %363 = vst.msk [vmem:[#allocation14 + $0x8] sm:$0xff] %vm361, %v358
    // Predicated region
    $region58: #{mlp_forward.1} parent=1 // pred_check
      _
    $region59: #{mlp_forward.1} parent=1 // pred_check_branch
      %365 = sbr.rel (0) target = $region61
    $region60: #{mlp_forward.1} parent=1 // pred_region
      %s367 = ssub.s32 256, 256
      %368 = vsyncadd [#allocation4], %s367
      %s369 = sshll.u32 [#allocation14], 4
      %s370 = int_to_ptr.vmem [resolvable:$true] %s369
      %375 = dma.vmem_to_hbm [thread:$0]  %s370, 256, %s7, [#allocation4], 128, 128, 8
    $region61: #{mlp_forward.1} parent=1 // pred_fallthru
      _
    // Predicated region
    $region62: #{mlp_forward.1} parent=1 // pred_check
      _
    $region63: #{mlp_forward.1} parent=1 // pred_check_branch
      %377 = sbr.rel (0) target = $region65
    $region64: #{mlp_forward.1} parent=1 // pred_region
      %378 = dma.done [#allocation4], 256
    $region65: #{mlp_forward.1} parent=1 // pred_fallthru
      _
    %379 = vsyncpa [#allocation3], 1
    %380 = vsyncpa [#allocation6], 1
    %381 = vsyncpa [#allocation9], 1
    %382 = vsyncpa [#allocation12], 1
    %383 = vsyncpa [#allocation4], 1

</llo_original>
